<compile_context>
chip_gen: v7x
topology: tpu7x:2x2x1
jax: 0.10.0
libtpu: 0.0.40
codegen_flags: <defaults>
</compile_context>

<pallas_src>
import jax
import jax.numpy as jnp
from jax.experimental import pallas as pl
from jax.experimental.pallas import tpu as pltpu

_IN, _HID, _OUT = 3, 10, 1
_LANES = 128


def _mlp_kernel(x_ref, w1_ref, b1_ref, w2_ref, b2_ref, o_ref):
    """One sublane+lane-dense batch tile.

    x_ref : (3, TR, 128) f32 VMEM -- feature k at x_ref[k]; batch on (sublane, lane)
    w1_ref: (30,)        f32 SMEM -- W1[k, j] at flat index k*10 + j  (in, out)
    b1_ref: (10,)        f32 SMEM
    w2_ref: (10,)        f32 SMEM
    b2_ref: (1,)         f32 SMEM
    o_ref : (TR, 128)    f32 VMEM
    """
    x0 = x_ref[0]                       # (TR, 128) full vregs
    x1 = x_ref[1]
    x2 = x_ref[2]

    # Two partial accumulators break the 10-deep serial chain; acc0 starts
    # from the fc2 bias so there is no trailing `+ b2` full-tile add.
    acc0 = jnp.full_like(x0, b2_ref[0])
    acc1 = jnp.zeros_like(x0)
    for j in range(_HID):
        h = (w1_ref[0 * _HID + j] * x0
             + w1_ref[1 * _HID + j] * x1
             + w1_ref[2 * _HID + j] * x2
             + b1_ref[j])
        h = w2_ref[j] * jnp.maximum(h, 0.0)
        if j % 2 == 0:
            acc0 = acc0 + h
        else:
            acc1 = acc1 + h

    o_ref[...] = (acc0 + acc1).astype(o_ref.dtype)


def _round_up(n, m):
    return (n + m - 1) // m * m


def net_forward(x, w1, b1, w2, b2, *, block_rows=None, feature_major=False):
    """Forward pass of Net.

    x : (B, 3) f32 (default), or (3, B) f32 with feature_major=True
        (transpose-free fast path; fold the transpose into the producer).
    w1: (3, 10), b1: (10,), w2: (10, 1), b2: (1,)
        (weights stored as (in_features, out_features) = PyTorch weight.T).
    Returns (B, 1) f32.
    """
    if feature_major:
        xf = x.astype(jnp.float32)            # already (3, B): no HBM transpose
    else:
        xf = x.astype(jnp.float32).T          # (B, 3) -> (3, B): one-time layout copy
    B = xf.shape[1]

    # Fold the batch onto (sublane, lane): rows of 128 lanes, 8-row granules.
    rows = pl.cdiv(B, _LANES)
    if block_rows is None:
        # ~2048 rows/step (256K batch elems, ~8 MiB double-buffered I/O), but
        # keep >= 2 grid steps so v7x's two TensorCores can split the batch.
        block_rows = min(2048, _round_up(pl.cdiv(rows, 2), 8))
    block_rows = max(8, _round_up(block_rows, 8))
    rows_p = _round_up(max(rows, block_rows), block_rows)
    Bp = rows_p * _LANES

    if Bp != B:
        xf = jnp.pad(xf, ((0, 0), (0, Bp - B)))   # zero-padded batch columns
    xf = xf.reshape(_IN, rows_p, _LANES)          # free reshape (split last dim)

    grid = (rows_p // block_rows,)
    smem = pl.BlockSpec(memory_space=pltpu.MemorySpace.SMEM)

    # Double-buffered in+out block footprint; keep an explicit, conservative
    # VMEM budget (safe on v7x's 64 MiB as well as v5e/v6e's 128 MiB).
    io_block_bytes = 2 * (_IN + _OUT) * block_rows * _LANES * 4
    vmem_limit = int(min(48 * 1024 * 1024, max(32 * 1024 * 1024, 3 * io_block_bytes)))

    out = pl.pallas_call(
        _mlp_kernel,
        out_shape=jax.ShapeDtypeStruct((rows_p, _LANES), jnp.float32),
        grid=grid,
        in_specs=[
            pl.BlockSpec((_IN, block_rows, _LANES), lambda i: (0, i, 0)),  # x tile
            smem, smem, smem, smem,                                        # params
        ],
        out_specs=pl.BlockSpec((block_rows, _LANES), lambda i: (i, 0)),
        compiler_params=pltpu.CompilerParams(
            dimension_semantics=("parallel",),       # megacore on v7x
            vmem_limit_bytes=vmem_limit),
        cost_estimate=pl.CostEstimate(
            flops=100 * Bp,
            transcendentals=0,
            bytes_accessed=4 * (_IN + _OUT) * Bp + 4 * 45),
    )(
        xf,
        w1.reshape(-1).astype(jnp.float32),
        b1.reshape(-1).astype(jnp.float32),
        w2.reshape(-1).astype(jnp.float32),
        b2.reshape(-1).astype(jnp.float32),
    )
    # Padded batch rows hold garbage (relu(b1)@w2 + b2); slice them off here
    # and never reduce over the padded output region downstream.
    return out.reshape(-1)[:B].reshape(B, 1)


def init_params(key):
    """Deterministic init mimicking nn.Linear's U(-1/sqrt(fan_in), 1/sqrt(fan_in))."""
    k1, k2, k3, k4 = jax.random.split(key, 4)
    bound1 = 1.0 / jnp.sqrt(3.0)
    bound2 = 1.0 / jnp.sqrt(10.0)
    # Stored as (in_features, out_features) = transpose of PyTorch's weight.
    w1 = jax.random.uniform(k1, (3, 10), jnp.float32, -bound1, bound1)
    b1 = jax.random.uniform(k2, (10,), jnp.float32, -bound1, bound1)
    w2 = jax.random.uniform(k3, (10, 1), jnp.float32, -bound2, bound2)
    b2 = jax.random.uniform(k4, (1,), jnp.float32, -bound2, bound2)
    return w1, b1, w2, b2


def _reference(x, w1, b1, w2, b2):
    return jnp.maximum(x @ w1 + b1, 0.0) @ w2 + b2


if __name__ == "__main__":
    key = jax.random.PRNGKey(0)
    k_params, k_small, k_big = jax.random.split(key, 3)
    w1, b1, w2, b2 = init_params(k_params)

    # Small demo batch (single (8, 128) tile after padding), standard (B, 3) API.
    B = 8
    x = jax.random.normal(k_small, (B, 3), jnp.float32)
    out = jax.block_until_ready(net_forward(x, w1, b1, w2, b2))
    ref = _reference(x, w1, b1, w2, b2)
    assert out.shape == (B, 1)
    assert jnp.allclose(out, ref, atol=1e-5, rtol=1e-5)

    # Larger batch via the transpose-free feature-major path; exercises batch
    # padding and a multi-step "parallel" batch grid (grid=(2,)).
    B2 = 2000
    x2_fm = jax.random.normal(k_big, (_IN, B2), jnp.float32)   # producer-side (3, B)
    out2 = jax.block_until_ready(
        net_forward(x2_fm, w1, b1, w2, b2, feature_major=True))
    ref2 = _reference(x2_fm.T, w1, b1, w2, b2)
    assert out2.shape == (B2, 1)
    assert jnp.allclose(out2, ref2, atol=1e-5, rtol=1e-5)

    print("KERNEL_OK")
</pallas_src>

<mosaic_0001>
module attributes {stable_mosaic.version = 11 : i64} {
  func.func @_mlp_kernel(%arg0: i32, %arg1: memref<3x8x128xf32, #tpu.memory_space<vmem>>, %arg2: memref<30xf32, #tpu.memory_space<smem>>, %arg3: memref<10xf32, #tpu.memory_space<smem>>, %arg4: memref<10xf32, #tpu.memory_space<smem>>, %arg5: memref<1xf32, #tpu.memory_space<smem>>, %arg6: memref<8x128xf32, #tpu.memory_space<vmem>>) attributes {dimension_semantics = [#tpu.dimension_semantics<parallel>], iteration_bounds = array<i64: 1>, scalar_prefetch = 0 : i64, scratch_operands = 0 : i64, tpu.core_type = #tpu.core_type<tc>, window_params = [{transform_indices = @transform_0, window_bounds = array<i64: 3, 8, 128>}, {transform_indices = @transform_1, window_bounds = array<i64: 30>}, {transform_indices = @transform_2, window_bounds = array<i64: 10>}, {transform_indices = @transform_3, window_bounds = array<i64: 10>}, {transform_indices = @transform_4, window_bounds = array<i64: 1>}, {transform_indices = @transform_5, window_bounds = array<i64: 8, 128>}]} {
    %c0 = arith.constant 0 : index
    %c0_0 = arith.constant 0 : index
    %c0_1 = arith.constant 0 : index
    %0 = vector.load %arg1[%c0, %c0_0, %c0_1] : memref<3x8x128xf32, #tpu.memory_space<vmem>>, vector<1x8x128xf32>
    %1 = vector.shape_cast %0 : vector<1x8x128xf32> to vector<8x128xf32>
    %c1 = arith.constant 1 : index
    %c0_2 = arith.constant 0 : index
    %c0_3 = arith.constant 0 : index
    %2 = vector.load %arg1[%c1, %c0_2, %c0_3] : memref<3x8x128xf32, #tpu.memory_space<vmem>>, vector<1x8x128xf32>
    %3 = vector.shape_cast %2 : vector<1x8x128xf32> to vector<8x128xf32>
    %c2 = arith.constant 2 : index
    %c0_4 = arith.constant 0 : index
    %c0_5 = arith.constant 0 : index
    %4 = vector.load %arg1[%c2, %c0_4, %c0_5] : memref<3x8x128xf32, #tpu.memory_space<vmem>>, vector<1x8x128xf32>
    %5 = vector.shape_cast %4 : vector<1x8x128xf32> to vector<8x128xf32>
    %c0_6 = arith.constant 0 : index
    %6 = memref.load %arg5[%c0_6] : memref<1xf32, #tpu.memory_space<smem>>
    %7 = vector.broadcast %6 : f32 to vector<8x128xf32>
    %cst = arith.constant 0.000000e+00 : f32
    %8 = vector.broadcast %cst : f32 to vector<8x128xf32>
    %c0_7 = arith.constant 0 : index
    %9 = memref.load %arg2[%c0_7] : memref<30xf32, #tpu.memory_space<smem>>
    %10 = vector.broadcast %9 : f32 to vector<8x128xf32>
    %11 = arith.mulf %10, %1 : vector<8x128xf32>
    %c10 = arith.constant 10 : index
    %12 = memref.load %arg2[%c10] : memref<30xf32, #tpu.memory_space<smem>>
    %13 = vector.broadcast %12 : f32 to vector<8x128xf32>
    %14 = arith.mulf %13, %3 : vector<8x128xf32>
    %15 = arith.addf %11, %14 : vector<8x128xf32>
    %c20 = arith.constant 20 : index
    %16 = memref.load %arg2[%c20] : memref<30xf32, #tpu.memory_space<smem>>
    %17 = vector.broadcast %16 : f32 to vector<8x128xf32>
    %18 = arith.mulf %17, %5 : vector<8x128xf32>
    %19 = arith.addf %15, %18 : vector<8x128xf32>
    %c0_8 = arith.constant 0 : index
    %20 = memref.load %arg3[%c0_8] : memref<10xf32, #tpu.memory_space<smem>>
    %21 = vector.broadcast %20 : f32 to vector<8x128xf32>
    %22 = arith.addf %19, %21 : vector<8x128xf32>
    %c0_9 = arith.constant 0 : index
    %23 = memref.load %arg4[%c0_9] : memref<10xf32, #tpu.memory_space<smem>>
    %cst_10 = arith.constant 0.000000e+00 : f32
    %24 = vector.broadcast %cst_10 : f32 to vector<8x128xf32>
    %25 = arith.maximumf %22, %24 : vector<8x128xf32>
    %26 = vector.broadcast %23 : f32 to vector<8x128xf32>
    %27 = arith.mulf %26, %25 : vector<8x128xf32>
    %28 = arith.addf %7, %27 : vector<8x128xf32>
    %c1_11 = arith.constant 1 : index
    %29 = memref.load %arg2[%c1_11] : memref<30xf32, #tpu.memory_space<smem>>
    %30 = vector.broadcast %29 : f32 to vector<8x128xf32>
    %31 = arith.mulf %30, %1 : vector<8x128xf32>
    %c11 = arith.constant 11 : index
    %32 = memref.load %arg2[%c11] : memref<30xf32, #tpu.memory_space<smem>>
    %33 = vector.broadcast %32 : f32 to vector<8x128xf32>
    %34 = arith.mulf %33, %3 : vector<8x128xf32>
    %35 = arith.addf %31, %34 : vector<8x128xf32>
    %c21 = arith.constant 21 : index
    %36 = memref.load %arg2[%c21] : memref<30xf32, #tpu.memory_space<smem>>
    %37 = vector.broadcast %36 : f32 to vector<8x128xf32>
    %38 = arith.mulf %37, %5 : vector<8x128xf32>
    %39 = arith.addf %35, %38 : vector<8x128xf32>
    %c1_12 = arith.constant 1 : index
    %40 = memref.load %arg3[%c1_12] : memref<10xf32, #tpu.memory_space<smem>>
    %41 = vector.broadcast %40 : f32 to vector<8x128xf32>
    %42 = arith.addf %39, %41 : vector<8x128xf32>
    %c1_13 = arith.constant 1 : index
    %43 = memref.load %arg4[%c1_13] : memref<10xf32, #tpu.memory_space<smem>>
    %cst_14 = arith.constant 0.000000e+00 : f32
    %44 = vector.broadcast %cst_14 : f32 to vector<8x128xf32>
    %45 = arith.maximumf %42, %44 : vector<8x128xf32>
    %46 = vector.broadcast %43 : f32 to vector<8x128xf32>
    %47 = arith.mulf %46, %45 : vector<8x128xf32>
    %48 = arith.addf %8, %47 : vector<8x128xf32>
    %c2_15 = arith.constant 2 : index
    %49 = memref.load %arg2[%c2_15] : memref<30xf32, #tpu.memory_space<smem>>
    %50 = vector.broadcast %49 : f32 to vector<8x128xf32>
    %51 = arith.mulf %50, %1 : vector<8x128xf32>
    %c12 = arith.constant 12 : index
    %52 = memref.load %arg2[%c12] : memref<30xf32, #tpu.memory_space<smem>>
    %53 = vector.broadcast %52 : f32 to vector<8x128xf32>
    %54 = arith.mulf %53, %3 : vector<8x128xf32>
    %55 = arith.addf %51, %54 : vector<8x128xf32>
    %c22 = arith.constant 22 : index
    %56 = memref.load %arg2[%c22] : memref<30xf32, #tpu.memory_space<smem>>
    %57 = vector.broadcast %56 : f32 to vector<8x128xf32>
    %58 = arith.mulf %57, %5 : vector<8x128xf32>
    %59 = arith.addf %55, %58 : vector<8x128xf32>
    %c2_16 = arith.constant 2 : index
    %60 = memref.load %arg3[%c2_16] : memref<10xf32, #tpu.memory_space<smem>>
    %61 = vector.broadcast %60 : f32 to vector<8x128xf32>
    %62 = arith.addf %59, %61 : vector<8x128xf32>
    %c2_17 = arith.constant 2 : index
    %63 = memref.load %arg4[%c2_17] : memref<10xf32, #tpu.memory_space<smem>>
    %cst_18 = arith.constant 0.000000e+00 : f32
    %64 = vector.broadcast %cst_18 : f32 to vector<8x128xf32>
    %65 = arith.maximumf %62, %64 : vector<8x128xf32>
    %66 = vector.broadcast %63 : f32 to vector<8x128xf32>
    %67 = arith.mulf %66, %65 : vector<8x128xf32>
    %68 = arith.addf %28, %67 : vector<8x128xf32>
    %c3 = arith.constant 3 : index
    %69 = memref.load %arg2[%c3] : memref<30xf32, #tpu.memory_space<smem>>
    %70 = vector.broadcast %69 : f32 to vector<8x128xf32>
    %71 = arith.mulf %70, %1 : vector<8x128xf32>
    %c13 = arith.constant 13 : index
    %72 = memref.load %arg2[%c13] : memref<30xf32, #tpu.memory_space<smem>>
    %73 = vector.broadcast %72 : f32 to vector<8x128xf32>
    %74 = arith.mulf %73, %3 : vector<8x128xf32>
    %75 = arith.addf %71, %74 : vector<8x128xf32>
    %c23 = arith.constant 23 : index
    %76 = memref.load %arg2[%c23] : memref<30xf32, #tpu.memory_space<smem>>
    %77 = vector.broadcast %76 : f32 to vector<8x128xf32>
    %78 = arith.mulf %77, %5 : vector<8x128xf32>
    %79 = arith.addf %75, %78 : vector<8x128xf32>
    %c3_19 = arith.constant 3 : index
    %80 = memref.load %arg3[%c3_19] : memref<10xf32, #tpu.memory_space<smem>>
    %81 = vector.broadcast %80 : f32 to vector<8x128xf32>
    %82 = arith.addf %79, %81 : vector<8x128xf32>
    %c3_20 = arith.constant 3 : index
    %83 = memref.load %arg4[%c3_20] : memref<10xf32, #tpu.memory_space<smem>>
    %cst_21 = arith.constant 0.000000e+00 : f32
    %84 = vector.broadcast %cst_21 : f32 to vector<8x128xf32>
    %85 = arith.maximumf %82, %84 : vector<8x128xf32>
    %86 = vector.broadcast %83 : f32 to vector<8x128xf32>
    %87 = arith.mulf %86, %85 : vector<8x128xf32>
    %88 = arith.addf %48, %87 : vector<8x128xf32>
    %c4 = arith.constant 4 : index
    %89 = memref.load %arg2[%c4] : memref<30xf32, #tpu.memory_space<smem>>
    %90 = vector.broadcast %89 : f32 to vector<8x128xf32>
    %91 = arith.mulf %90, %1 : vector<8x128xf32>
    %c14 = arith.constant 14 : index
    %92 = memref.load %arg2[%c14] : memref<30xf32, #tpu.memory_space<smem>>
    %93 = vector.broadcast %92 : f32 to vector<8x128xf32>
    %94 = arith.mulf %93, %3 : vector<8x128xf32>
    %95 = arith.addf %91, %94 : vector<8x128xf32>
    %c24 = arith.constant 24 : index
    %96 = memref.load %arg2[%c24] : memref<30xf32, #tpu.memory_space<smem>>
    %97 = vector.broadcast %96 : f32 to vector<8x128xf32>
    %98 = arith.mulf %97, %5 : vector<8x128xf32>
    %99 = arith.addf %95, %98 : vector<8x128xf32>
    %c4_22 = arith.constant 4 : index
    %100 = memref.load %arg3[%c4_22] : memref<10xf32, #tpu.memory_space<smem>>
    %101 = vector.broadcast %100 : f32 to vector<8x128xf32>
    %102 = arith.addf %99, %101 : vector<8x128xf32>
    %c4_23 = arith.constant 4 : index
    %103 = memref.load %arg4[%c4_23] : memref<10xf32, #tpu.memory_space<smem>>
    %cst_24 = arith.constant 0.000000e+00 : f32
    %104 = vector.broadcast %cst_24 : f32 to vector<8x128xf32>
    %105 = arith.maximumf %102, %104 : vector<8x128xf32>
    %106 = vector.broadcast %103 : f32 to vector<8x128xf32>
    %107 = arith.mulf %106, %105 : vector<8x128xf32>
    %108 = arith.addf %68, %107 : vector<8x128xf32>
    %c5 = arith.constant 5 : index
    %109 = memref.load %arg2[%c5] : memref<30xf32, #tpu.memory_space<smem>>
    %110 = vector.broadcast %109 : f32 to vector<8x128xf32>
    %111 = arith.mulf %110, %1 : vector<8x128xf32>
    %c15 = arith.constant 15 : index
    %112 = memref.load %arg2[%c15] : memref<30xf32, #tpu.memory_space<smem>>
    %113 = vector.broadcast %112 : f32 to vector<8x128xf32>
    %114 = arith.mulf %113, %3 : vector<8x128xf32>
    %115 = arith.addf %111, %114 : vector<8x128xf32>
    %c25 = arith.constant 25 : index
    %116 = memref.load %arg2[%c25] : memref<30xf32, #tpu.memory_space<smem>>
    %117 = vector.broadcast %116 : f32 to vector<8x128xf32>
    %118 = arith.mulf %117, %5 : vector<8x128xf32>
    %119 = arith.addf %115, %118 : vector<8x128xf32>
    %c5_25 = arith.constant 5 : index
    %120 = memref.load %arg3[%c5_25] : memref<10xf32, #tpu.memory_space<smem>>
    %121 = vector.broadcast %120 : f32 to vector<8x128xf32>
    %122 = arith.addf %119, %121 : vector<8x128xf32>
    %c5_26 = arith.constant 5 : index
    %123 = memref.load %arg4[%c5_26] : memref<10xf32, #tpu.memory_space<smem>>
    %cst_27 = arith.constant 0.000000e+00 : f32
    %124 = vector.broadcast %cst_27 : f32 to vector<8x128xf32>
    %125 = arith.maximumf %122, %124 : vector<8x128xf32>
    %126 = vector.broadcast %123 : f32 to vector<8x128xf32>
    %127 = arith.mulf %126, %125 : vector<8x128xf32>
    %128 = arith.addf %88, %127 : vector<8x128xf32>
    %c6 = arith.constant 6 : index
    %129 = memref.load %arg2[%c6] : memref<30xf32, #tpu.memory_space<smem>>
    %130 = vector.broadcast %129 : f32 to vector<8x128xf32>
    %131 = arith.mulf %130, %1 : vector<8x128xf32>
    %c16 = arith.constant 16 : index
    %132 = memref.load %arg2[%c16] : memref<30xf32, #tpu.memory_space<smem>>
    %133 = vector.broadcast %132 : f32 to vector<8x128xf32>
    %134 = arith.mulf %133, %3 : vector<8x128xf32>
    %135 = arith.addf %131, %134 : vector<8x128xf32>
    %c26 = arith.constant 26 : index
    %136 = memref.load %arg2[%c26] : memref<30xf32, #tpu.memory_space<smem>>
    %137 = vector.broadcast %136 : f32 to vector<8x128xf32>
    %138 = arith.mulf %137, %5 : vector<8x128xf32>
    %139 = arith.addf %135, %138 : vector<8x128xf32>
    %c6_28 = arith.constant 6 : index
    %140 = memref.load %arg3[%c6_28] : memref<10xf32, #tpu.memory_space<smem>>
    %141 = vector.broadcast %140 : f32 to vector<8x128xf32>
    %142 = arith.addf %139, %141 : vector<8x128xf32>
    %c6_29 = arith.constant 6 : index
    %143 = memref.load %arg4[%c6_29] : memref<10xf32, #tpu.memory_space<smem>>
    %cst_30 = arith.constant 0.000000e+00 : f32
    %144 = vector.broadcast %cst_30 : f32 to vector<8x128xf32>
    %145 = arith.maximumf %142, %144 : vector<8x128xf32>
    %146 = vector.broadcast %143 : f32 to vector<8x128xf32>
    %147 = arith.mulf %146, %145 : vector<8x128xf32>
    %148 = arith.addf %108, %147 : vector<8x128xf32>
    %c7 = arith.constant 7 : index
    %149 = memref.load %arg2[%c7] : memref<30xf32, #tpu.memory_space<smem>>
    %150 = vector.broadcast %149 : f32 to vector<8x128xf32>
    %151 = arith.mulf %150, %1 : vector<8x128xf32>
    %c17 = arith.constant 17 : index
    %152 = memref.load %arg2[%c17] : memref<30xf32, #tpu.memory_space<smem>>
    %153 = vector.broadcast %152 : f32 to vector<8x128xf32>
    %154 = arith.mulf %153, %3 : vector<8x128xf32>
    %155 = arith.addf %151, %154 : vector<8x128xf32>
    %c27 = arith.constant 27 : index
    %156 = memref.load %arg2[%c27] : memref<30xf32, #tpu.memory_space<smem>>
    %157 = vector.broadcast %156 : f32 to vector<8x128xf32>
    %158 = arith.mulf %157, %5 : vector<8x128xf32>
    %159 = arith.addf %155, %158 : vector<8x128xf32>
    %c7_31 = arith.constant 7 : index
    %160 = memref.load %arg3[%c7_31] : memref<10xf32, #tpu.memory_space<smem>>
    %161 = vector.broadcast %160 : f32 to vector<8x128xf32>
    %162 = arith.addf %159, %161 : vector<8x128xf32>
    %c7_32 = arith.constant 7 : index
    %163 = memref.load %arg4[%c7_32] : memref<10xf32, #tpu.memory_space<smem>>
    %cst_33 = arith.constant 0.000000e+00 : f32
    %164 = vector.broadcast %cst_33 : f32 to vector<8x128xf32>
    %165 = arith.maximumf %162, %164 : vector<8x128xf32>
    %166 = vector.broadcast %163 : f32 to vector<8x128xf32>
    %167 = arith.mulf %166, %165 : vector<8x128xf32>
    %168 = arith.addf %128, %167 : vector<8x128xf32>
    %c8 = arith.constant 8 : index
    %169 = memref.load %arg2[%c8] : memref<30xf32, #tpu.memory_space<smem>>
    %170 = vector.broadcast %169 : f32 to vector<8x128xf32>
    %171 = arith.mulf %170, %1 : vector<8x128xf32>
    %c18 = arith.constant 18 : index
    %172 = memref.load %arg2[%c18] : memref<30xf32, #tpu.memory_space<smem>>
    %173 = vector.broadcast %172 : f32 to vector<8x128xf32>
    %174 = arith.mulf %173, %3 : vector<8x128xf32>
    %175 = arith.addf %171, %174 : vector<8x128xf32>
    %c28 = arith.constant 28 : index
    %176 = memref.load %arg2[%c28] : memref<30xf32, #tpu.memory_space<smem>>
    %177 = vector.broadcast %176 : f32 to vector<8x128xf32>
    %178 = arith.mulf %177, %5 : vector<8x128xf32>
    %179 = arith.addf %175, %178 : vector<8x128xf32>
    %c8_34 = arith.constant 8 : index
    %180 = memref.load %arg3[%c8_34] : memref<10xf32, #tpu.memory_space<smem>>
    %181 = vector.broadcast %180 : f32 to vector<8x128xf32>
    %182 = arith.addf %179, %181 : vector<8x128xf32>
    %c8_35 = arith.constant 8 : index
    %183 = memref.load %arg4[%c8_35] : memref<10xf32, #tpu.memory_space<smem>>
    %cst_36 = arith.constant 0.000000e+00 : f32
    %184 = vector.broadcast %cst_36 : f32 to vector<8x128xf32>
    %185 = arith.maximumf %182, %184 : vector<8x128xf32>
    %186 = vector.broadcast %183 : f32 to vector<8x128xf32>
    %187 = arith.mulf %186, %185 : vector<8x128xf32>
    %188 = arith.addf %148, %187 : vector<8x128xf32>
    %c9 = arith.constant 9 : index
    %189 = memref.load %arg2[%c9] : memref<30xf32, #tpu.memory_space<smem>>
    %190 = vector.broadcast %189 : f32 to vector<8x128xf32>
    %191 = arith.mulf %190, %1 : vector<8x128xf32>
    %c19 = arith.constant 19 : index
    %192 = memref.load %arg2[%c19] : memref<30xf32, #tpu.memory_space<smem>>
    %193 = vector.broadcast %192 : f32 to vector<8x128xf32>
    %194 = arith.mulf %193, %3 : vector<8x128xf32>
    %195 = arith.addf %191, %194 : vector<8x128xf32>
    %c29 = arith.constant 29 : index
    %196 = memref.load %arg2[%c29] : memref<30xf32, #tpu.memory_space<smem>>
    %197 = vector.broadcast %196 : f32 to vector<8x128xf32>
    %198 = arith.mulf %197, %5 : vector<8x128xf32>
    %199 = arith.addf %195, %198 : vector<8x128xf32>
    %c9_37 = arith.constant 9 : index
    %200 = memref.load %arg3[%c9_37] : memref<10xf32, #tpu.memory_space<smem>>
    %201 = vector.broadcast %200 : f32 to vector<8x128xf32>
    %202 = arith.addf %199, %201 : vector<8x128xf32>
    %c9_38 = arith.constant 9 : index
    %203 = memref.load %arg4[%c9_38] : memref<10xf32, #tpu.memory_space<smem>>
    %cst_39 = arith.constant 0.000000e+00 : f32
    %204 = vector.broadcast %cst_39 : f32 to vector<8x128xf32>
    %205 = arith.maximumf %202, %204 : vector<8x128xf32>
    %206 = vector.broadcast %203 : f32 to vector<8x128xf32>
    %207 = arith.mulf %206, %205 : vector<8x128xf32>
    %208 = arith.addf %168, %207 : vector<8x128xf32>
    %209 = arith.addf %188, %208 : vector<8x128xf32>
    %c0_40 = arith.constant 0 : index
    %c0_41 = arith.constant 0 : index
    %210 = vector.load %arg6[%c0_40, %c0_41] : memref<8x128xf32, #tpu.memory_space<vmem>>, vector<8x128xf32>
    tpu.vector_store %arg6[%c0_40, %c0_41], %209 {strides = array<i32>} : memref<8x128xf32, #tpu.memory_space<vmem>>, vector<8x128xf32>,
    return
  }
  func.func @transform_0(%arg0: i32) -> (i32, i32, i32) {
    %c0_i32 = arith.constant 0 : i32
    %c0_i32_0 = arith.constant 0 : i32
    %c0_i32_1 = arith.constant 0 : i32
    return %c0_i32, %arg0, %c0_i32_0 : i32, i32, i32
  }
  func.func @transform_1(%arg0: i32) -> i32 {
    %c0_i32 = arith.constant 0 : i32
    %c0_i32_0 = arith.constant 0 : i32
    return %c0_i32 : i32
  }
  func.func @transform_2(%arg0: i32) -> i32 {
    %c0_i32 = arith.constant 0 : i32
    %c0_i32_0 = arith.constant 0 : i32
    return %c0_i32 : i32
  }
  func.func @transform_3(%arg0: i32) -> i32 {
    %c0_i32 = arith.constant 0 : i32
    %c0_i32_0 = arith.constant 0 : i32
    return %c0_i32 : i32
  }
  func.func @transform_4(%arg0: i32) -> i32 {
    %c0_i32 = arith.constant 0 : i32
    %c0_i32_0 = arith.constant 0 : i32
    return %c0_i32 : i32
  }
  func.func @transform_5(%arg0: i32) -> (i32, i32) {
    %c0_i32 = arith.constant 0 : i32
    %c0_i32_0 = arith.constant 0 : i32
    return %arg0, %c0_i32 : i32, i32
  }
}

</mosaic_0001>

<llo_original>
// kernel: tpu_custom_call.1
$region0: #{tpu_custom_call.1}
  #allocation0 [shape = 'u32[]', space=smem, size = 0x4, offset = 0x4, fixed_abs, tag = 'smem constant byte address 0x4 - core index']
  #allocation1 [shape = 'u32[144,128]{1,0:T(1,128)}', space=vmem, size = 0x12000, scoped, tag = 'internal scratch']
  #allocation2 [shape = 'f32[1]{0:T(128)S(6)}', space=smem, size = 0x200, scoped, tag = 'scoped memory for tpu_custom_call.1']
  %s0 = inlined_call_operand.hbm [shape: f32[3,8,128], index: 0, kind: input, shape index: {}]
  %s1 = inlined_call_operand.vmem [shape: f32[30], index: 1, kind: input, shape index: {}]
  %s2 = inlined_call_operand.vmem [shape: f32[10], index: 2, kind: input, shape index: {}]
  %s3 = inlined_call_operand.vmem [shape: f32[10], index: 3, kind: input, shape index: {}]
  %s4 = inlined_call_operand.<no memory space> [shape: f32[1], index: 4, kind: input, shape index: {}]
  %s5 = inlined_call_operand.hbm [shape: f32[8,128], index: 5, kind: output, shape index: {}]
  %s6 = sld [smem:[#allocation0]]
  $region46: #{tpu_custom_call.1} parent=0
    _
  %s8 = ssub.s32 1, %s6
  %s9 = scalar_select 0, %s8, %s6
  %10 = sst [smem:[#allocation2]] %s4
  $region1: #{tpu_custom_call.1} parent=0
    #allocation3 [shape = 'u8[12288]{0}', space=vmem, size = 0x3000, scoped, tag = 'input window, operand 0, single buffered']
    #allocation4 [shape = 's32[1]{0}', space=sflag, size = 0x4, scoped, tag = 'scoped memory for tpu_custom_call.1']
    #allocation5 [shape = 's32[1]{0}', space=sflag, size = 0x4, scoped, tag = 'scoped memory for tpu_custom_call.1']
    #allocation6 [shape = 's32[1]{0}', space=sflag, size = 0x4, scoped, tag = 'scoped memory for tpu_custom_call.1']
    #allocation7 [shape = 'u8[512]{0}', space=smem, size = 0x200, scoped, tag = 'input window, operand 1, single buffered']
    #allocation8 [shape = 'u8[512]{0}', space=smem, size = 0x200, scoped, tag = 'input window, operand 2, single buffered']
    #allocation9 [shape = 's32[1]{0}', space=sflag, size = 0x4, scoped, tag = 'scoped memory for tpu_custom_call.1']
    #allocation10 [shape = 'u8[512]{0}', space=smem, size = 0x200, scoped, tag = 'input window, operand 3, single buffered']
    #allocation11 [shape = 'u8[4096]{0}', space=vmem, size = 0x1000, scoped, tag = 'output window, operand 0, single buffered']
    %11 = vsyncpa [#allocation4], 0
    %12 = vsyncpa [#allocation6], 0
    %13 = vsyncpa [#allocation9], 0
    %14 = vsyncpa [#allocation5], 0
    // Predicated region
    $region2: #{tpu_custom_call.1} parent=1 // pred_check
      _
    $region3: #{tpu_custom_call.1} parent=1 // pred_check_branch
      %16 = sbr.rel (0) target = $region5
    $region4: #{tpu_custom_call.1} parent=1 // pred_region
      %s18 = ssub.s32 384, 384
      %19 = vsyncadd [#allocation4], %s18
      %s20 = sshll.u32 [#allocation3], 4
      %s21 = int_to_ptr.vmem [resolvable:$true] %s20
      %26 = dma.hbm_to_vmem [thread:$0]  %s0, 384, %s21, [#allocation4], 128, 128, 8
    $region5: #{tpu_custom_call.1} parent=1 // pred_fallthru
      _
    // Predicated region
    $region6: #{tpu_custom_call.1} parent=1 // pred_check
      _
    $region7: #{tpu_custom_call.1} parent=1 // pred_check_branch
      %28 = sbr.rel (0) target = $region9
    $region8: #{tpu_custom_call.1} parent=1 // pred_region
      %s30 = ssub.s32 16, 16
      %31 = vsyncadd [#allocation6], %s30
      %s33 = sshll.u32 %s1, 4
      %s34 = int_to_ptr.vmem [resolvable:$true] %s33
      %36 = dma.vmem_to_smem %s34, 16, [#allocation7], [#allocation6]
    $region9: #{tpu_custom_call.1} parent=1 // pred_fallthru
      _
    // Predicated region
    $region10: #{tpu_custom_call.1} parent=1 // pred_check
      _
    $region11: #{tpu_custom_call.1} parent=1 // pred_check_branch
      %38 = sbr.rel (0) target = $region13
    $region12: #{tpu_custom_call.1} parent=1 // pred_region
      %s40 = ssub.s32 16, 16
      %41 = vsyncadd [#allocation9], %s40
      %s43 = sshll.u32 %s2, 4
      %s44 = int_to_ptr.vmem [resolvable:$true] %s43
      %46 = dma.vmem_to_smem %s44, 16, [#allocation8], [#allocation9]
    $region13: #{tpu_custom_call.1} parent=1 // pred_fallthru
      _
    // Predicated region
    $region14: #{tpu_custom_call.1} parent=1 // pred_check
      _
    $region15: #{tpu_custom_call.1} parent=1 // pred_check_branch
      %48 = sbr.rel (0) target = $region17
    $region16: #{tpu_custom_call.1} parent=1 // pred_region
      %s50 = ssub.s32 16, 16
      %51 = vsyncadd [#allocation9], %s50
      %s53 = sshll.u32 %s3, 4
      %s54 = int_to_ptr.vmem [resolvable:$true] %s53
      %56 = dma.vmem_to_smem %s54, 16, [#allocation10], [#allocation9]
    $region17: #{tpu_custom_call.1} parent=1 // pred_fallthru
      _
    // Predicated region
    $region18: #{tpu_custom_call.1} parent=1 // pred_check
      _
    $region19: #{tpu_custom_call.1} parent=1 // pred_check_branch
      %58 = sbr.rel (0) target = $region21
    $region20: #{tpu_custom_call.1} parent=1 // pred_region
      _
    $region21: #{tpu_custom_call.1} parent=1 // pred_fallthru
      _
    // Predicated region
    $region22: #{tpu_custom_call.1} parent=1 // pred_check
      _
    $region23: #{tpu_custom_call.1} parent=1 // pred_check_branch
      %60 = sbr.rel (0) target = $region25
    $region24: #{tpu_custom_call.1} parent=1 // pred_region
      %61 = dma.done [#allocation4], 384
    $region25: #{tpu_custom_call.1} parent=1 // pred_fallthru
      _
    // Predicated region
    $region26: #{tpu_custom_call.1} parent=1 // pred_check
      _
    $region27: #{tpu_custom_call.1} parent=1 // pred_check_branch
      %63 = sbr.rel (0) target = $region29
    $region28: #{tpu_custom_call.1} parent=1 // pred_region
      %64 = dma.done [#allocation6], 16
    $region29: #{tpu_custom_call.1} parent=1 // pred_fallthru
      _
    // Predicated region
    $region30: #{tpu_custom_call.1} parent=1 // pred_check
      _
    $region31: #{tpu_custom_call.1} parent=1 // pred_check_branch
      %66 = sbr.rel (0) target = $region33
    $region32: #{tpu_custom_call.1} parent=1 // pred_region
      %67 = dma.done [#allocation9], 16
    $region33: #{tpu_custom_call.1} parent=1 // pred_fallthru
      _
    // Predicated region
    $region34: #{tpu_custom_call.1} parent=1 // pred_check
      _
    $region35: #{tpu_custom_call.1} parent=1 // pred_check_branch
      %69 = sbr.rel (0) target = $region37
    $region36: #{tpu_custom_call.1} parent=1 // pred_region
      %70 = dma.done [#allocation9], 16
    $region37: #{tpu_custom_call.1} parent=1 // pred_fallthru
      _
    %71 = sfence
    %v72 = vld [vmem:[#allocation3] sm:$0xff]
    %s73 = scalar_lea.vmem [#allocation3], 8
    %v74 = vld [vmem:[%s73] sm:$0xff]
    %s75 = scalar_lea.vmem [#allocation3], 16
    %v76 = vld [vmem:[%s75] sm:$0xff]
    %s77 = sld [smem:[#allocation2]]
    %v78 = vstv %s77
    %s79 = sld [smem:[#allocation7]]
    %v80 = vstv %s79
    %v81 = vmul.f32 %v80, %v72
    %s82 = sld [smem:[#allocation7 + $0xa]]
    %v83 = vstv %s82
    %v84 = vmul.f32 %v83, %v74
    %v85 = vadd.f32 %v81, %v84
    %s86 = sld [smem:[#allocation7 + $0x14]]
    %v87 = vstv %s86
    %v88 = vmul.f32 %v87, %v76
    %v89 = vadd.f32 %v85, %v88
    %s90 = sld [smem:[#allocation8]]
    %v91 = vstv %s90
    %v92 = vadd.f32 %v89, %v91
    %s93 = sld [smem:[#allocation10]]
    %v94 = vmax.f32 %v92, 0.0
    %v95 = vstv %s93
    %v96 = vmul.f32 %v95, %v94
    %v97 = vadd.f32 %v78, %v96
    %s98 = sld [smem:[#allocation7 + $0x1]]
    %v99 = vstv %s98
    %v100 = vmul.f32 %v99, %v72
    %s101 = sld [smem:[#allocation7 + $0xb]]
    %v102 = vstv %s101
    %v103 = vmul.f32 %v102, %v74
    %v104 = vadd.f32 %v100, %v103
    %s105 = sld [smem:[#allocation7 + $0x15]]
    %v106 = vstv %s105
    %v107 = vmul.f32 %v106, %v76
    %v108 = vadd.f32 %v104, %v107
    %s109 = sld [smem:[#allocation8 + $0x1]]
    %v110 = vstv %s109
    %v111 = vadd.f32 %v108, %v110
    %s112 = sld [smem:[#allocation10 + $0x1]]
    %v113 = vmax.f32 %v111, 0.0
    %v114 = vstv %s112
    %v115 = vmul.f32 %v114, %v113
    %v116 = vadd.f32 %v115, 0.0
    %s117 = sld [smem:[#allocation7 + $0x2]]
    %v118 = vstv %s117
    %v119 = vmul.f32 %v118, %v72
    %s120 = sld [smem:[#allocation7 + $0xc]]
    %v121 = vstv %s120
    %v122 = vmul.f32 %v121, %v74
    %v123 = vadd.f32 %v119, %v122
    %s124 = sld [smem:[#allocation7 + $0x16]]
    %v125 = vstv %s124
    %v126 = vmul.f32 %v125, %v76
    %v127 = vadd.f32 %v123, %v126
    %s128 = sld [smem:[#allocation8 + $0x2]]
    %v129 = vstv %s128
    %v130 = vadd.f32 %v127, %v129
    %s131 = sld [smem:[#allocation10 + $0x2]]
    %v132 = vmax.f32 %v130, 0.0
    %v133 = vstv %s131
    %v134 = vmul.f32 %v133, %v132
    %v135 = vadd.f32 %v97, %v134
    %s136 = sld [smem:[#allocation7 + $0x3]]
    %v137 = vstv %s136
    %v138 = vmul.f32 %v137, %v72
    %s139 = sld [smem:[#allocation7 + $0xd]]
    %v140 = vstv %s139
    %v141 = vmul.f32 %v140, %v74
    %v142 = vadd.f32 %v138, %v141
    %s143 = sld [smem:[#allocation7 + $0x17]]
    %v144 = vstv %s143
    %v145 = vmul.f32 %v144, %v76
    %v146 = vadd.f32 %v142, %v145
    %s147 = sld [smem:[#allocation8 + $0x3]]
    %v148 = vstv %s147
    %v149 = vadd.f32 %v146, %v148
    %s150 = sld [smem:[#allocation10 + $0x3]]
    %v151 = vmax.f32 %v149, 0.0
    %v152 = vstv %s150
    %v153 = vmul.f32 %v152, %v151
    %v154 = vadd.f32 %v116, %v153
    %s155 = sld [smem:[#allocation7 + $0x4]]
    %v156 = vstv %s155
    %v157 = vmul.f32 %v156, %v72
    %s158 = sld [smem:[#allocation7 + $0xe]]
    %v159 = vstv %s158
    %v160 = vmul.f32 %v159, %v74
    %v161 = vadd.f32 %v157, %v160
    %s162 = sld [smem:[#allocation7 + $0x18]]
    %v163 = vstv %s162
    %v164 = vmul.f32 %v163, %v76
    %v165 = vadd.f32 %v161, %v164
    %s166 = sld [smem:[#allocation8 + $0x4]]
    %v167 = vstv %s166
    %v168 = vadd.f32 %v165, %v167
    %s169 = sld [smem:[#allocation10 + $0x4]]
    %v170 = vmax.f32 %v168, 0.0
    %v171 = vstv %s169
    %v172 = vmul.f32 %v171, %v170
    %v173 = vadd.f32 %v135, %v172
    %s174 = sld [smem:[#allocation7 + $0x5]]
    %v175 = vstv %s174
    %v176 = vmul.f32 %v175, %v72
    %s177 = sld [smem:[#allocation7 + $0xf]]
    %v178 = vstv %s177
    %v179 = vmul.f32 %v178, %v74
    %v180 = vadd.f32 %v176, %v179
    %s181 = sld [smem:[#allocation7 + $0x19]]
    %v182 = vstv %s181
    %v183 = vmul.f32 %v182, %v76
    %v184 = vadd.f32 %v180, %v183
    %s185 = sld [smem:[#allocation8 + $0x5]]
    %v186 = vstv %s185
    %v187 = vadd.f32 %v184, %v186
    %s188 = sld [smem:[#allocation10 + $0x5]]
    %v189 = vmax.f32 %v187, 0.0
    %v190 = vstv %s188
    %v191 = vmul.f32 %v190, %v189
    %v192 = vadd.f32 %v154, %v191
    %s193 = sld [smem:[#allocation7 + $0x6]]
    %v194 = vstv %s193
    %v195 = vmul.f32 %v194, %v72
    %s196 = sld [smem:[#allocation7 + $0x10]]
    %v197 = vstv %s196
    %v198 = vmul.f32 %v197, %v74
    %v199 = vadd.f32 %v195, %v198
    %s200 = sld [smem:[#allocation7 + $0x1a]]
    %v201 = vstv %s200
    %v202 = vmul.f32 %v201, %v76
    %v203 = vadd.f32 %v199, %v202
    %s204 = sld [smem:[#allocation8 + $0x6]]
    %v205 = vstv %s204
    %v206 = vadd.f32 %v203, %v205
    %s207 = sld [smem:[#allocation10 + $0x6]]
    %v208 = vmax.f32 %v206, 0.0
    %v209 = vstv %s207
    %v210 = vmul.f32 %v209, %v208
    %v211 = vadd.f32 %v173, %v210
    %s212 = sld [smem:[#allocation7 + $0x7]]
    %v213 = vstv %s212
    %v214 = vmul.f32 %v213, %v72
    %s215 = sld [smem:[#allocation7 + $0x11]]
    %v216 = vstv %s215
    %v217 = vmul.f32 %v216, %v74
    %v218 = vadd.f32 %v214, %v217
    %s219 = sld [smem:[#allocation7 + $0x1b]]
    %v220 = vstv %s219
    %v221 = vmul.f32 %v220, %v76
    %v222 = vadd.f32 %v218, %v221
    %s223 = sld [smem:[#allocation8 + $0x7]]
    %v224 = vstv %s223
    %v225 = vadd.f32 %v222, %v224
    %s226 = sld [smem:[#allocation10 + $0x7]]
    %v227 = vmax.f32 %v225, 0.0
    %v228 = vstv %s226
    %v229 = vmul.f32 %v228, %v227
    %v230 = vadd.f32 %v192, %v229
    %s231 = sld [smem:[#allocation7 + $0x8]]
    %v232 = vstv %s231
    %v233 = vmul.f32 %v232, %v72
    %s234 = sld [smem:[#allocation7 + $0x12]]
    %v235 = vstv %s234
    %v236 = vmul.f32 %v235, %v74
    %v237 = vadd.f32 %v233, %v236
    %s238 = sld [smem:[#allocation7 + $0x1c]]
    %v239 = vstv %s238
    %v240 = vmul.f32 %v239, %v76
    %v241 = vadd.f32 %v237, %v240
    %s242 = sld [smem:[#allocation8 + $0x8]]
    %v243 = vstv %s242
    %v244 = vadd.f32 %v241, %v243
    %s245 = sld [smem:[#allocation10 + $0x8]]
    %v246 = vmax.f32 %v244, 0.0
    %v247 = vstv %s245
    %v248 = vmul.f32 %v247, %v246
    %v249 = vadd.f32 %v211, %v248
    %s250 = sld [smem:[#allocation7 + $0x9]]
    %v251 = vstv %s250
    %v252 = vmul.f32 %v251, %v72
    %s253 = sld [smem:[#allocation7 + $0x13]]
    %v254 = vstv %s253
    %v255 = vmul.f32 %v254, %v74
    %v256 = vadd.f32 %v252, %v255
    %s257 = sld [smem:[#allocation7 + $0x1d]]
    %v258 = vstv %s257
    %v259 = vmul.f32 %v258, %v76
    %v260 = vadd.f32 %v256, %v259
    %s261 = sld [smem:[#allocation8 + $0x9]]
    %v262 = vstv %s261
    %v263 = vadd.f32 %v260, %v262
    %s264 = sld [smem:[#allocation10 + $0x9]]
    %v265 = vmax.f32 %v263, 0.0
    %v266 = vstv %s264
    %v267 = vmul.f32 %v266, %v265
    %v268 = vadd.f32 %v230, %v267
    %v269 = vadd.f32 %v249, %v268
    %270 = vst [vmem:[#allocation11] sm:$0xff] %v269
    // Predicated region
    $region38: #{tpu_custom_call.1} parent=1 // pred_check
      _
    $region39: #{tpu_custom_call.1} parent=1 // pred_check_branch
      %272 = sbr.rel (0) target = $region41
    $region40: #{tpu_custom_call.1} parent=1 // pred_region
      %s274 = ssub.s32 128, 128
      %275 = vsyncadd [#allocation5], %s274
      %s277 = sshll.u32 [#allocation11], 4
      %s278 = int_to_ptr.vmem [resolvable:$true] %s277
      %280 = dma.vmem_to_hbm [thread:$0]  %s278, 128, %s5, [#allocation5]
    $region41: #{tpu_custom_call.1} parent=1 // pred_fallthru
      _
    // Predicated region
    $region42: #{tpu_custom_call.1} parent=1 // pred_check
      _
    $region43: #{tpu_custom_call.1} parent=1 // pred_check_branch
      %282 = sbr.rel (0) target = $region45
    $region44: #{tpu_custom_call.1} parent=1 // pred_region
      %283 = dma.done [#allocation5], 128
    $region45: #{tpu_custom_call.1} parent=1 // pred_fallthru
      _
    %284 = vsyncpa [#allocation4], 1
    %285 = vsyncpa [#allocation5], 1
    %286 = vsyncpa [#allocation6], 1
    %287 = vsyncpa [#allocation9], 1

</llo_original>
